<compile_context>
chip_gen: v6e
topology: v6e:2x2x1
jax: 0.10.0
libtpu: 0.0.40
codegen_flags: <defaults>
</compile_context>

<pallas_src>
import jax
import jax.numpy as jnp
from jax import lax
from jax.experimental import pallas as pl
from jax.experimental.pallas import tpu as pltpu

NEG_INF = -1e30  # value used by the standard QANet `mask_logits` helper


def _mask_logits(target, mask):
    # Reference (PyTorch) formulation: t * m + (1 - m) * (-1e30).
    return target * mask + (1.0 - mask) * NEG_INF


# ----------------------------------------------------------------------------
# Pallas kernel: one grid step == one batch element, full (Lc, Lq, D) tiles.
# ----------------------------------------------------------------------------
def tri_attention_kernel(c_ref, q_ref, cmask_ref, qmask_ref,
                         w4c_ref, w4q_ref, w4mlu_ref, bias_ref,
                         out_ref):
    D = c_ref.shape[-1]

    c = c_ref[0]                       # [Lc, D] f32
    q = q_ref[0]                       # [Lq, D] f32
    cmask = cmask_ref[0] != 0.0        # [Lc, 1] bool
    qmask = qmask_ref[0] != 0.0        # [1, Lq] bool
    w4c = w4c_ref[...]                 # [1, D]
    w4q = w4q_ref[...]                 # [1, D]
    w4m = w4mlu_ref[...]               # [1, D]
    bias = bias_ref[0]                 # f32 scalar (SMEM)

    neg = jnp.float32(NEG_INF)

    # Segment 0 of the output (masked copy of C): store early, independent of matmuls.
    out_ref[0, :, pl.ds(0, D)] = jnp.where(cmask, c, neg)

    # ---- trilinear logits: S = (C*w4mlu) @ Q^T + C@w4C + (Q@w4Q)^T + bias ----------
    sub0 = jnp.sum(c * w4c, axis=1, keepdims=True) + bias              # [Lc, 1] (VPU)
    sub1 = lax.dot_general(w4q, q, (((1,), (1,)), ((), ())),
                           preferred_element_type=jnp.float32)          # [1, Lq]
    sub2 = lax.dot_general(c * w4m, q, (((1,), (1,)), ((), ())),
                           preferred_element_type=jnp.float32)          # [Lc, Lq]
    s = sub2 + sub0 + sub1                                              # [Lc, Lq]

    # S_mask = mask_logits(mask_logits(S, Qmask), Cmask) — single select per mask.
    s = jnp.where(qmask, s, neg)
    s = jnp.where(cmask, s, neg)

    # ---- softmaxes (normalization deferred where possible) --------------------------
    rowmax = jnp.max(s, axis=1, keepdims=True)                          # [Lc, 1]
    e1 = jnp.exp(s - rowmax)                                            # [Lc, Lq]
    inv_rowsum = pl.reciprocal(jnp.sum(e1, axis=1, keepdims=True),
                               approx=False)                            # [Lc, 1]

    colmax = jnp.max(s, axis=0, keepdims=True)                          # [1, Lq]
    e2 = jnp.exp(s - colmax)                                            # [Lc, Lq]
    s2 = e2 * pl.reciprocal(jnp.sum(e2, axis=0, keepdims=True),
                            approx=False)                               # [Lc, Lq]

    # ---- A = S1 @ Q ; B = S1 @ (S2^T @ C)  (reassociated: no Lc x Lc intermediate) --
    # bf16 MXU operands, f32 accumulation.
    e1b = e1.astype(jnp.bfloat16)
    a = jnp.dot(e1b, q.astype(jnp.bfloat16),
                preferred_element_type=jnp.float32) * inv_rowsum        # [Lc, D]
    t = lax.dot_general(s2.astype(jnp.bfloat16), c.astype(jnp.bfloat16),
                        (((0,), (0,)), ((), ())),
                        preferred_element_type=jnp.float32)             # [Lq, D]
    b = jnp.dot(e1b, t.astype(jnp.bfloat16),
                preferred_element_type=jnp.float32) * inv_rowsum        # [Lc, D]

    # ---- masked segment stores (no [Lc, 4D] concat temporary) -----------------------
    out_ref[0, :, pl.ds(D, D)] = jnp.where(cmask, a, neg)
    out_ref[0, :, pl.ds(2 * D, D)] = jnp.where(cmask, c * a, neg)
    out_ref[0, :, pl.ds(3 * D, D)] = jnp.where(cmask, c * b, neg)


# ----------------------------------------------------------------------------
# Wrapper
# ----------------------------------------------------------------------------
@jax.jit
def tri_attention(C, Q, Cmask, Qmask, w4C, w4Q, w4mlu, bias):
    B, Lc, D = C.shape
    _, Lq, _ = Q.shape

    C = C.astype(jnp.float32)
    Q = Q.astype(jnp.float32)
    cmask3 = Cmask.reshape(B, Lc, 1).astype(jnp.float32)
    qmask3 = Qmask.reshape(B, 1, Lq).astype(jnp.float32)
    # Lane-dense [1, D] parameter layouts (avoid 128-lane padding of [D, 1] columns).
    w4c_r = w4C.reshape(1, D).astype(jnp.float32)
    w4q_r = w4Q.reshape(1, D).astype(jnp.float32)
    w4m_r = w4mlu.reshape(1, D).astype(jnp.float32)
    bias_r = bias.reshape(1).astype(jnp.float32)

    return pl.pallas_call(
        tri_attention_kernel,
        out_shape=jax.ShapeDtypeStruct((B, Lc, 4 * D), jnp.float32),
        grid_spec=pltpu.PrefetchScalarGridSpec(
            num_scalar_prefetch=0,
            grid=(B,),
            in_specs=[
                pl.BlockSpec((1, Lc, D), lambda b: (b, 0, 0)),      # C
                pl.BlockSpec((1, Lq, D), lambda b: (b, 0, 0)),      # Q
                pl.BlockSpec((1, Lc, 1), lambda b: (b, 0, 0)),      # Cmask
                pl.BlockSpec((1, 1, Lq), lambda b: (b, 0, 0)),      # Qmask
                pl.BlockSpec((1, D), lambda b: (0, 0)),             # w4C (lane-dense)
                pl.BlockSpec((1, D), lambda b: (0, 0)),             # w4Q (lane-dense)
                pl.BlockSpec((1, D), lambda b: (0, 0)),             # w4mlu (lane-dense)
                pl.BlockSpec(memory_space=pltpu.SMEM),              # bias (scalar)
            ],
            out_specs=pl.BlockSpec((1, Lc, 4 * D), lambda b: (b, 0, 0)),
        ),
        compiler_params=pltpu.CompilerParams(
            dimension_semantics=("parallel",)),
    )(C, Q, cmask3, qmask3, w4c_r, w4q_r, w4m_r, bias_r)


# ----------------------------------------------------------------------------
# Pure-JAX reference (mirrors the PyTorch forward, eval mode, f32 throughout)
# ----------------------------------------------------------------------------
def tri_attention_ref(C, Q, Cmask, Qmask, w4C, w4Q, w4mlu, bias):
    B, Lc, D = C.shape
    _, Lq, _ = Q.shape
    sub0 = C @ w4C                                           # [B, Lc, 1]
    sub1 = jnp.transpose(Q @ w4Q, (0, 2, 1))                 # [B, 1, Lq]
    sub2 = jnp.einsum('bcd,bqd->bcq', C * w4mlu.reshape(1, 1, D), Q)
    S = sub0 + sub1 + sub2 + bias
    cm = Cmask.reshape(B, Lc, 1).astype(jnp.float32)
    qm = Qmask.reshape(B, 1, Lq).astype(jnp.float32)
    S = _mask_logits(_mask_logits(S, qm), cm)
    S1 = jax.nn.softmax(S, axis=2)
    S2 = jax.nn.softmax(S, axis=1)
    A = jnp.einsum('bcq,bqd->bcd', S1, Q)
    SS = jnp.einsum('bcq,bkq->bck', S1, S2)                  # S1 @ S2^T
    Bm = jnp.einsum('bck,bkd->bcd', SS, C)
    out = jnp.concatenate([C, A, C * A, C * Bm], axis=2)
    return _mask_logits(out, cm)


if __name__ == "__main__":
    B, Lc, Lq, D = 2, 16, 8, 32

    key = jax.random.PRNGKey(0)
    kc, kq, kcm, kqm, k1, k2, k3 = jax.random.split(key, 7)

    C = jax.random.normal(kc, (B, Lc, D), dtype=jnp.float32)
    Q = jax.random.normal(kq, (B, Lq, D), dtype=jnp.float32)
    Cmask = (jax.random.uniform(kcm, (B, Lc)) > 0.2).astype(jnp.float32)
    Qmask = (jax.random.uniform(kqm, (B, Lq)) > 0.2).astype(jnp.float32)

    # Deterministic xavier_uniform-style parameter init (matching PyTorch shapes).
    bound_w4 = (6.0 / (D + 1)) ** 0.5          # shape (D, 1): fan_in=1, fan_out=D
    bound_mlu = (6.0 / (2 * D)) ** 0.5         # shape (1, 1, D): fan_in=fan_out=D
    w4C = jax.random.uniform(k1, (D, 1), minval=-bound_w4, maxval=bound_w4,
                             dtype=jnp.float32)
    w4Q = jax.random.uniform(k2, (D, 1), minval=-bound_w4, maxval=bound_w4,
                             dtype=jnp.float32)
    w4mlu = jax.random.uniform(k3, (1, 1, D), minval=-bound_mlu, maxval=bound_mlu,
                               dtype=jnp.float32)
    bias = jnp.zeros((1,), dtype=jnp.float32)

    out = tri_attention(C, Q, Cmask, Qmask, w4C, w4Q, w4mlu, bias)
    out = jax.block_until_ready(out)

    ref = tri_attention_ref(C, Q, Cmask, Qmask, w4C, w4Q, w4mlu, bias)
    ref = jax.block_until_ready(ref)

    assert out.shape == (B, Lc, 4 * D), out.shape
    import numpy as np
    # Tolerance loosened vs. pure-f32: the A/B probability matmuls run with bf16 MXU
    # operands (f32 accumulation); the reference is full f32.
    np.testing.assert_allclose(np.asarray(out), np.asarray(ref),
                               rtol=5e-2, atol=5e-2)
    print("KERNEL_OK")
</pallas_src>

<mosaic_0001>
module attributes {stable_mosaic.version = 11 : i64} {
  func.func @tri_attention_kernel(%arg0: i32, %arg1: memref<1x16x32xf32, #tpu.memory_space<vmem>>, %arg2: memref<1x8x32xf32, #tpu.memory_space<vmem>>, %arg3: memref<1x16x1xf32, #tpu.memory_space<vmem>>, %arg4: memref<1x1x8xf32, #tpu.memory_space<vmem>>, %arg5: memref<1x32xf32, #tpu.memory_space<vmem>>, %arg6: memref<1x32xf32, #tpu.memory_space<vmem>>, %arg7: memref<1x32xf32, #tpu.memory_space<vmem>>, %arg8: memref<1xf32, #tpu.memory_space<smem>>, %arg9: memref<1x16x128xf32, #tpu.memory_space<vmem>>) attributes {dimension_semantics = [#tpu.dimension_semantics<parallel>], iteration_bounds = array<i64: 2>, scalar_prefetch = 0 : i64, scratch_operands = 0 : i64, tpu.core_type = #tpu.core_type<tc>, window_params = [{transform_indices = @transform_0, window_bounds = array<i64: 1, 16, 32>}, {transform_indices = @transform_1, window_bounds = array<i64: 1, 8, 32>}, {transform_indices = @transform_2, window_bounds = array<i64: 1, 16, 1>}, {transform_indices = @transform_3, window_bounds = array<i64: 1, 1, 8>}, {pipeline_mode = #tpu.pipeline_mode<synchronous>, transform_indices = @transform_4, window_bounds = array<i64: 1, 32>}, {pipeline_mode = #tpu.pipeline_mode<synchronous>, transform_indices = @transform_5, window_bounds = array<i64: 1, 32>}, {pipeline_mode = #tpu.pipeline_mode<synchronous>, transform_indices = @transform_6, window_bounds = array<i64: 1, 32>}, {transform_indices = @transform_7, window_bounds = array<i64: 1>}, {transform_indices = @transform_8, window_bounds = array<i64: 1, 16, 128>}]} {
    %c0 = arith.constant 0 : index
    %c0_0 = arith.constant 0 : index
    %c0_1 = arith.constant 0 : index
    %0 = vector.load %arg1[%c0, %c0_0, %c0_1] : memref<1x16x32xf32, #tpu.memory_space<vmem>>, vector<1x16x32xf32>
    %1 = vector.shape_cast %0 : vector<1x16x32xf32> to vector<16x32xf32>
    %c0_2 = arith.constant 0 : index
    %c0_3 = arith.constant 0 : index
    %c0_4 = arith.constant 0 : index
    %2 = vector.load %arg2[%c0_2, %c0_3, %c0_4] : memref<1x8x32xf32, #tpu.memory_space<vmem>>, vector<1x8x32xf32>
    %3 = vector.shape_cast %2 : vector<1x8x32xf32> to vector<8x32xf32>
    %c0_5 = arith.constant 0 : index
    %c0_6 = arith.constant 0 : index
    %c0_7 = arith.constant 0 : index
    %4 = vector.load %arg3[%c0_5, %c0_6, %c0_7] : memref<1x16x1xf32, #tpu.memory_space<vmem>>, vector<1x16x1xf32>
    %5 = vector.shape_cast %4 : vector<1x16x1xf32> to vector<16x1xf32>
    %cst = arith.constant 0.000000e+00 : f32
    %6 = vector.broadcast %cst : f32 to vector<16x1xf32>
    %7 = arith.cmpf one, %5, %6 : vector<16x1xf32>
    %c0_8 = arith.constant 0 : index
    %c0_9 = arith.constant 0 : index
    %c0_10 = arith.constant 0 : index
    %8 = vector.load %arg4[%c0_8, %c0_9, %c0_10] : memref<1x1x8xf32, #tpu.memory_space<vmem>>, vector<1x1x8xf32>
    %9 = vector.shape_cast %8 : vector<1x1x8xf32> to vector<1x8xf32>
    %cst_11 = arith.constant 0.000000e+00 : f32
    %10 = vector.broadcast %cst_11 : f32 to vector<1x8xf32>
    %11 = arith.cmpf one, %9, %10 : vector<1x8xf32>
    %c0_12 = arith.constant 0 : index
    %c0_13 = arith.constant 0 : index
    %12 = vector.load %arg5[%c0_12, %c0_13] : memref<1x32xf32, #tpu.memory_space<vmem>>, vector<1x32xf32>
    %c0_14 = arith.constant 0 : index
    %c0_15 = arith.constant 0 : index
    %13 = vector.load %arg6[%c0_14, %c0_15] : memref<1x32xf32, #tpu.memory_space<vmem>>, vector<1x32xf32>
    %c0_16 = arith.constant 0 : index
    %c0_17 = arith.constant 0 : index
    %14 = vector.load %arg7[%c0_16, %c0_17] : memref<1x32xf32, #tpu.memory_space<vmem>>, vector<1x32xf32>
    %c0_18 = arith.constant 0 : index
    %15 = memref.load %arg8[%c0_18] : memref<1xf32, #tpu.memory_space<smem>>
    %cst_19 = arith.constant -1.000000e+30 : f32
    %16 = vector.shape_cast %7 : vector<16x1xi1> to vector<16x1xi1>
    %17 = vector.broadcast %16 : vector<16x1xi1> to vector<16x32xi1>
    %18 = vector.broadcast %cst_19 : f32 to vector<16x32xf32>
    %19 = arith.select %17, %1, %18 : vector<16x32xi1>, vector<16x32xf32>
    %c0_20 = arith.constant 0 : index
    %c0_21 = arith.constant 0 : index
    %c0_22 = arith.constant 0 : index
    %20 = vector.load %arg9[%c0_20, %c0_21, %c0_22] : memref<1x16x128xf32, #tpu.memory_space<vmem>>, vector<1x16x32xf32>
    %21 = vector.shape_cast %20 : vector<1x16x32xf32> to vector<16x32xf32>
    %22 = vector.shape_cast %19 : vector<16x32xf32> to vector<1x16x32xf32>
    tpu.vector_store %arg9[%c0_20, %c0_21, %c0_22], %22 {strides = array<i32>} : memref<1x16x128xf32, #tpu.memory_space<vmem>>, vector<1x16x32xf32>,
    %23 = vector.broadcast %12 : vector<1x32xf32> to vector<16x32xf32>
    %24 = arith.mulf %1, %23 : vector<16x32xf32>
    %cst_23 = arith.constant dense<0.000000e+00> : vector<16xf32>
    %25 = vector.multi_reduction <add>, %24, %cst_23 [1] : vector<16x32xf32> to vector<16xf32>
    %26 = vector.shape_cast %25 : vector<16xf32> to vector<16x1xf32>
    %27 = vector.broadcast %15 : f32 to vector<16x1xf32>
    %28 = arith.addf %26, %27 : vector<16x1xf32>
    %cst_24 = arith.constant dense<0.000000e+00> : vector<1x8xf32>
    %29 = tpu.matmul %13, %3, %cst_24 {dimension_numbers = #tpu.dot_dimension_numbers<[1], [1], [0], [0], [0, 0, 1, 0], [], []>} : vector<1x32xf32>, vector<8x32xf32>, vector<1x8xf32> -> vector<1x8xf32>
    %30 = vector.broadcast %14 : vector<1x32xf32> to vector<16x32xf32>
    %31 = arith.mulf %1, %30 : vector<16x32xf32>
    %cst_25 = arith.constant dense<0.000000e+00> : vector<16x8xf32>
    %32 = tpu.matmul %31, %3, %cst_25 {dimension_numbers = #tpu.dot_dimension_numbers<[1], [1], [0], [0], [0, 0, 1, 0], [], []>} : vector<16x32xf32>, vector<8x32xf32>, vector<16x8xf32> -> vector<16x8xf32>
    %33 = vector.broadcast %28 : vector<16x1xf32> to vector<16x8xf32>
    %34 = arith.addf %32, %33 : vector<16x8xf32>
    %35 = vector.broadcast %29 : vector<1x8xf32> to vector<16x8xf32>
    %36 = arith.addf %34, %35 : vector<16x8xf32>
    %cst_26 = arith.constant -1.000000e+30 : f32
    %37 = vector.shape_cast %11 : vector<1x8xi1> to vector<1x8xi1>
    %38 = vector.broadcast %37 : vector<1x8xi1> to vector<16x8xi1>
    %39 = vector.broadcast %cst_26 : f32 to vector<16x8xf32>
    %40 = arith.select %38, %36, %39 : vector<16x8xi1>, vector<16x8xf32>
    %cst_27 = arith.constant -1.000000e+30 : f32
    %41 = vector.shape_cast %7 : vector<16x1xi1> to vector<16x1xi1>
    %42 = vector.broadcast %41 : vector<16x1xi1> to vector<16x8xi1>
    %43 = vector.broadcast %cst_27 : f32 to vector<16x8xf32>
    %44 = arith.select %42, %40, %43 : vector<16x8xi1>, vector<16x8xf32>
    %cst_28 = arith.constant dense<0xFF800000> : vector<16xf32>
    %45 = vector.multi_reduction <maximumf>, %44, %cst_28 [1] : vector<16x8xf32> to vector<16xf32>
    %46 = vector.shape_cast %45 : vector<16xf32> to vector<16x1xf32>
    %47 = vector.broadcast %46 : vector<16x1xf32> to vector<16x8xf32>
    %48 = arith.subf %44, %47 : vector<16x8xf32>
    %49 = math.exp %48 : vector<16x8xf32>
    %cst_29 = arith.constant dense<0.000000e+00> : vector<16xf32>
    %50 = vector.multi_reduction <add>, %49, %cst_29 [1] : vector<16x8xf32> to vector<16xf32>
    %51 = vector.shape_cast %50 : vector<16xf32> to vector<16x1xf32>
    %52 = tpu.reciprocal %51 : vector<16x1xf32> -> vector<16x1xf32>
    %cst_30 = arith.constant dense<0xFF800000> : vector<8xf32>
    %53 = vector.multi_reduction <maximumf>, %44, %cst_30 [0] : vector<16x8xf32> to vector<8xf32>
    %54 = vector.shape_cast %53 : vector<8xf32> to vector<1x8xf32>
    %55 = vector.broadcast %54 : vector<1x8xf32> to vector<16x8xf32>
    %56 = arith.subf %44, %55 : vector<16x8xf32>
    %57 = math.exp %56 : vector<16x8xf32>
    %cst_31 = arith.constant dense<0.000000e+00> : vector<8xf32>
    %58 = vector.multi_reduction <add>, %57, %cst_31 [0] : vector<16x8xf32> to vector<8xf32>
    %59 = vector.shape_cast %58 : vector<8xf32> to vector<1x8xf32>
    %60 = tpu.reciprocal %59 : vector<1x8xf32> -> vector<1x8xf32>
    %61 = vector.broadcast %60 : vector<1x8xf32> to vector<16x8xf32>
    %62 = arith.mulf %57, %61 : vector<16x8xf32>
    %63 = arith.truncf %49 : vector<16x8xf32> to vector<16x8xbf16>
    %64 = arith.truncf %3 : vector<8x32xf32> to vector<8x32xbf16>
    %cst_32 = arith.constant dense<0.000000e+00> : vector<16x32xf32>
    %65 = tpu.matmul %63, %64, %cst_32 {dimension_numbers = #tpu.dot_dimension_numbers<[1], [0], [0], [1], [0, 0, 1, 1], [], []>} : vector<16x8xbf16>, vector<8x32xbf16>, vector<16x32xf32> -> vector<16x32xf32>
    %66 = vector.broadcast %52 : vector<16x1xf32> to vector<16x32xf32>
    %67 = arith.mulf %65, %66 : vector<16x32xf32>
    %68 = arith.truncf %62 : vector<16x8xf32> to vector<16x8xbf16>
    %69 = arith.truncf %1 : vector<16x32xf32> to vector<16x32xbf16>
    %cst_33 = arith.constant dense<0.000000e+00> : vector<8x32xf32>
    %70 = tpu.matmul %68, %69, %cst_33 {dimension_numbers = #tpu.dot_dimension_numbers<[0], [0], [1], [1], [0, 1, 1, 1], [], []>} : vector<16x8xbf16>, vector<16x32xbf16>, vector<8x32xf32> -> vector<8x32xf32>
    %71 = arith.truncf %70 : vector<8x32xf32> to vector<8x32xbf16>
    %cst_34 = arith.constant dense<0.000000e+00> : vector<16x32xf32>
    %72 = tpu.matmul %63, %71, %cst_34 {dimension_numbers = #tpu.dot_dimension_numbers<[1], [0], [0], [1], [0, 0, 1, 1], [], []>} : vector<16x8xbf16>, vector<8x32xbf16>, vector<16x32xf32> -> vector<16x32xf32>
    %73 = vector.broadcast %52 : vector<16x1xf32> to vector<16x32xf32>
    %74 = arith.mulf %72, %73 : vector<16x32xf32>
    %cst_35 = arith.constant -1.000000e+30 : f32
    %75 = vector.shape_cast %7 : vector<16x1xi1> to vector<16x1xi1>
    %76 = vector.broadcast %75 : vector<16x1xi1> to vector<16x32xi1>
    %77 = vector.broadcast %cst_35 : f32 to vector<16x32xf32>
    %78 = arith.select %76, %67, %77 : vector<16x32xi1>, vector<16x32xf32>
    %c0_36 = arith.constant 0 : index
    %c0_37 = arith.constant 0 : index
    %c32 = arith.constant 32 : index
    %79 = vector.load %arg9[%c0_36, %c0_37, %c32] : memref<1x16x128xf32, #tpu.memory_space<vmem>>, vector<1x16x32xf32>
    %80 = vector.shape_cast %79 : vector<1x16x32xf32> to vector<16x32xf32>
    %81 = vector.shape_cast %78 : vector<16x32xf32> to vector<1x16x32xf32>
    tpu.vector_store %arg9[%c0_36, %c0_37, %c32], %81 {strides = array<i32>} : memref<1x16x128xf32, #tpu.memory_space<vmem>>, vector<1x16x32xf32>,
    %82 = arith.mulf %1, %67 : vector<16x32xf32>
    %cst_38 = arith.constant -1.000000e+30 : f32
    %83 = vector.shape_cast %7 : vector<16x1xi1> to vector<16x1xi1>
    %84 = vector.broadcast %83 : vector<16x1xi1> to vector<16x32xi1>
    %85 = vector.broadcast %cst_38 : f32 to vector<16x32xf32>
    %86 = arith.select %84, %82, %85 : vector<16x32xi1>, vector<16x32xf32>
    %c0_39 = arith.constant 0 : index
    %c0_40 = arith.constant 0 : index
    %c64 = arith.constant 64 : index
    %87 = vector.load %arg9[%c0_39, %c0_40, %c64] : memref<1x16x128xf32, #tpu.memory_space<vmem>>, vector<1x16x32xf32>
    %88 = vector.shape_cast %87 : vector<1x16x32xf32> to vector<16x32xf32>
    %89 = vector.shape_cast %86 : vector<16x32xf32> to vector<1x16x32xf32>
    tpu.vector_store %arg9[%c0_39, %c0_40, %c64], %89 {strides = array<i32>} : memref<1x16x128xf32, #tpu.memory_space<vmem>>, vector<1x16x32xf32>,
    %90 = arith.mulf %1, %74 : vector<16x32xf32>
    %cst_41 = arith.constant -1.000000e+30 : f32
    %91 = vector.shape_cast %7 : vector<16x1xi1> to vector<16x1xi1>
    %92 = vector.broadcast %91 : vector<16x1xi1> to vector<16x32xi1>
    %93 = vector.broadcast %cst_41 : f32 to vector<16x32xf32>
    %94 = arith.select %92, %90, %93 : vector<16x32xi1>, vector<16x32xf32>
    %c0_42 = arith.constant 0 : index
    %c0_43 = arith.constant 0 : index
    %c96 = arith.constant 96 : index
    %95 = vector.load %arg9[%c0_42, %c0_43, %c96] : memref<1x16x128xf32, #tpu.memory_space<vmem>>, vector<1x16x32xf32>
    %96 = vector.shape_cast %95 : vector<1x16x32xf32> to vector<16x32xf32>
    %97 = vector.shape_cast %94 : vector<16x32xf32> to vector<1x16x32xf32>
    tpu.vector_store %arg9[%c0_42, %c0_43, %c96], %97 {strides = array<i32>} : memref<1x16x128xf32, #tpu.memory_space<vmem>>, vector<1x16x32xf32>,
    return
  }
  func.func @transform_0(%arg0: i32) -> (i32, i32, i32) {
    %c0_i32 = arith.constant 0 : i32
    %c0_i32_0 = arith.constant 0 : i32
    %c0_i32_1 = arith.constant 0 : i32
    return %arg0, %c0_i32, %c0_i32_0 : i32, i32, i32
  }
  func.func @transform_1(%arg0: i32) -> (i32, i32, i32) {
    %c0_i32 = arith.constant 0 : i32
    %c0_i32_0 = arith.constant 0 : i32
    %c0_i32_1 = arith.constant 0 : i32
    return %arg0, %c0_i32, %c0_i32_0 : i32, i32, i32
  }
  func.func @transform_2(%arg0: i32) -> (i32, i32, i32) {
    %c0_i32 = arith.constant 0 : i32
    %c0_i32_0 = arith.constant 0 : i32
    %c0_i32_1 = arith.constant 0 : i32
    return %arg0, %c0_i32, %c0_i32_0 : i32, i32, i32
  }
  func.func @transform_3(%arg0: i32) -> (i32, i32, i32) {
    %c0_i32 = arith.constant 0 : i32
    %c0_i32_0 = arith.constant 0 : i32
    %c0_i32_1 = arith.constant 0 : i32
    return %arg0, %c0_i32, %c0_i32_0 : i32, i32, i32
  }
  func.func @transform_4(%arg0: i32) -> (i32, i32) {
    %c0_i32 = arith.constant 0 : i32
    %c0_i32_0 = arith.constant 0 : i32
    %c0_i32_1 = arith.constant 0 : i32
    return %c0_i32, %c0_i32_0 : i32, i32
  }
  func.func @transform_5(%arg0: i32) -> (i32, i32) {
    %c0_i32 = arith.constant 0 : i32
    %c0_i32_0 = arith.constant 0 : i32
    %c0_i32_1 = arith.constant 0 : i32
    return %c0_i32, %c0_i32_0 : i32, i32
  }
  func.func @transform_6(%arg0: i32) -> (i32, i32) {
    %c0_i32 = arith.constant 0 : i32
    %c0_i32_0 = arith.constant 0 : i32
    %c0_i32_1 = arith.constant 0 : i32
    return %c0_i32, %c0_i32_0 : i32, i32
  }
  func.func @transform_7(%arg0: i32) -> i32 {
    %c0_i32 = arith.constant 0 : i32
    %c0_i32_0 = arith.constant 0 : i32
    return %c0_i32 : i32
  }
  func.func @transform_8(%arg0: i32) -> (i32, i32, i32) {
    %c0_i32 = arith.constant 0 : i32
    %c0_i32_0 = arith.constant 0 : i32
    %c0_i32_1 = arith.constant 0 : i32
    return %arg0, %c0_i32, %c0_i32_0 : i32, i32, i32
  }
}

</mosaic_0001>

<llo_original>
// kernel: tri_attention.1
$region0: #{tri_attention.1}
  #allocation0 [shape = 'u32[]', space=smem, size = 0x4, offset = 0x4, fixed_abs, tag = 'smem constant byte address 0x4 - core index']
  #allocation1 [shape = 'u32[144,128]{1,0:T(1,128)}', space=vmem, size = 0x12000, scoped, tag = 'internal scratch']
  #allocation2 [shape = 'f32[1]{0:T(128)S(6)}', space=smem, size = 0x200, scoped, tag = 'scoped memory for tri_attention.1']
  %s0 = inlined_call_operand.vmem [shape: f32[2,16,32], index: 0, kind: input, shape index: {}]
  %s1 = inlined_call_operand.hbm [shape: f32[2,8,32], index: 1, kind: input, shape index: {}]
  %s2 = inlined_call_operand.vmem [shape: f32[2,16,1], index: 2, kind: input, shape index: {}]
  %s3 = inlined_call_operand.vmem [shape: f32[2,1,8], index: 3, kind: input, shape index: {}]
  %s4 = inlined_call_operand.vmem [shape: f32[1,32], index: 4, kind: input, shape index: {}]
  %s5 = inlined_call_operand.vmem [shape: f32[1,32], index: 5, kind: input, shape index: {}]
  %s6 = inlined_call_operand.vmem [shape: f32[1,32], index: 6, kind: input, shape index: {}]
  %s7 = inlined_call_operand.<no memory space> [shape: f32[1], index: 7, kind: input, shape index: {}]
  %s8 = inlined_call_operand.hbm [shape: f32[2,16,128], index: 8, kind: output, shape index: {}]
  %s9 = sld [smem:[#allocation0]]
  $region69: #{tri_attention.1} parent=0
    _
  %s11 = ssub.s32 1, %s9
  %s12 = scalar_select 0, %s11, %s9
  %13 = sst [smem:[#allocation2]] %s7
  $region1: #{tri_attention.1} parent=0
    #allocation3 [shape = 'u8[8192]{0}', space=vmem, size = 0x2000, scoped, tag = 'input window, operand 1']
    #allocation4 [shape = 's32[2]{0}', space=sflag, size = 0x8, scoped, tag = 'scoped memory for tri_attention.1']
    #allocation5 [shape = 's32[2]{0}', space=sflag, size = 0x8, scoped, tag = 'scoped memory for tri_attention.1']
    #allocation6 [shape = 'u8[16384]{0}', space=vmem, size = 0x4000, scoped, tag = 'output window, operand 0']
    %14 = vsyncpa [#allocation4], 0
    %s15 = scalar_lea.sflag [#allocation4], 1
    %16 = vsyncpa %s15, 0
    %17 = vsyncpa [#allocation5], 0
    %s18 = scalar_lea.sflag [#allocation5], 1
    %19 = vsyncpa %s18, 0
    loop: start=0, step=1, limit=4
    $region2: #{tri_attention.1} parent=1 // loop_pre_header
      _
    $region3: #{tri_attention.1} parent=1 // loop_header
      %s21 = sphi 0, %s25
      %p22 = scmp.ge.s32.totalorder %s21, 4
      %s31 = sphi 0, %s33
      %s34 = sphi 0, %s31
      %s35 = sphi 0, %s34
      %s51 = sphi 0, %s35
      %s57 = sphi 0, %s59
      %s60 = sphi 0, %s57
      %s61 = sphi 0, %s60
      %s77 = sphi 0, %s61
      %s83 = sphi 0, %s85
      %s86 = sphi 0, %s83
      %s87 = sphi 0, %s86
      %s103 = sphi 0, %s87
      %s109 = sphi 0, %s111
      %s112 = sphi 0, %s109
      %s113 = sphi 0, %s112
      %s129 = sphi 0, %s113
      %s133 = sphi 0, %s133
      %s135 = sphi 0, %s133
      %s136 = sphi 0, %s135
      %s150 = sphi 0, %s136
      %s154 = sphi 0, %s154
      %s156 = sphi 0, %s154
      %s157 = sphi 0, %s156
      %s171 = sphi 0, %s157
      %s175 = sphi 0, %s175
      %s177 = sphi 0, %s175
      %s178 = sphi 0, %s177
      %s192 = sphi 0, %s178
      %s196 = sphi 0, %s196
      %s198 = sphi 0, %s196
      %s199 = sphi 0, %s198
      %s213 = sphi 0, %s199
      %s219 = sphi 0, %s221
      %s222 = sphi 0, %s219
      %s223 = sphi 0, %s222
      %s239 = sphi 0, %s223
    $region4: #{tri_attention.1} parent=1 // loop_header_branch
      %24 = sbr.rel (%p22) target = $region8
    $region5: #{tri_attention.1} parent=1 // loop_body
      %s26 = ssub.s32 %s21, 1
      %s27 = ssub.s32 %s21, 2
      %s28 = sadd.s32 %s21, 1
      %s29 = ssub.s32 %s21, %s28
      %p30 = scmp.eq.s32.totalorder %s29, 0
      %s32 = sadd.s32 %s31, 1
      %s33 = scalar_select %p30, %s31, %s32
      %p36 = pneg %p30
      %p37 = scmp.eq.s32.totalorder %s21, 1
      %p38 = por %p36, %p37
      %p39 = scmp.ne.s32.totalorder %s31, %s34
      %p40 = scmp.eq.s32.totalorder %s21, 0
      %p41 = por %p39, %p40
      %p42 = scmp.ne.s32.totalorder %s31, %s34
      %p43 = scmp.eq.s32.totalorder %s26, 1
      %p44 = por %p42, %p43
      %p45 = scmp.ne.s32.totalorder %s34, %s35
      %p46 = scmp.eq.s32.totalorder %s26, 0
      %p47 = por %p45, %p46
      %p48 = scmp.ne.s32.totalorder %s34, %s35
      %p49 = scmp.eq.s32.totalorder %s27, 1
      %p50 = por %p48, %p49
      %p52 = scmp.ne.s32.totalorder %s35, %s51
      %p53 = scmp.eq.s32.totalorder %s27, 0
      %p54 = por %p52, %p53
      %s55 = ssub.s32 %s21, %s28
      %p56 = scmp.eq.s32.totalorder %s55, 0
      %s58 = sadd.s32 %s57, 1
      %s59 = scalar_select %p56, %s57, %s58
      %p62 = pneg %p56
      %p63 = scmp.eq.s32.totalorder %s21, 1
      %p64 = por %p62, %p63
      %p65 = scmp.ne.s32.totalorder %s57, %s60
      %p66 = scmp.eq.s32.totalorder %s21, 0
      %p67 = por %p65, %p66
      %p68 = scmp.ne.s32.totalorder %s57, %s60
      %p69 = scmp.eq.s32.totalorder %s26, 1
      %p70 = por %p68, %p69
      %p71 = scmp.ne.s32.totalorder %s60, %s61
      %p72 = scmp.eq.s32.totalorder %s26, 0
      %p73 = por %p71, %p72
      %p74 = scmp.ne.s32.totalorder %s60, %s61
      %p75 = scmp.eq.s32.totalorder %s27, 1
      %p76 = por %p74, %p75
      %p78 = scmp.ne.s32.totalorder %s61, %s77
      %p79 = scmp.eq.s32.totalorder %s27, 0
      %p80 = por %p78, %p79
      %s81 = ssub.s32 %s21, %s28
      %p82 = scmp.eq.s32.totalorder %s81, 0
      %s84 = sadd.s32 %s83, 1
      %s85 = scalar_select %p82, %s83, %s84
      %p88 = pneg %p82
      %p89 = scmp.eq.s32.totalorder %s21, 1
      %p90 = por %p88, %p89
      %p91 = scmp.ne.s32.totalorder %s83, %s86
      %p92 = scmp.eq.s32.totalorder %s21, 0
      %p93 = por %p91, %p92
      %p94 = scmp.ne.s32.totalorder %s83, %s86
      %p95 = scmp.eq.s32.totalorder %s26, 1
      %p96 = por %p94, %p95
      %p97 = scmp.ne.s32.totalorder %s86, %s87
      %p98 = scmp.eq.s32.totalorder %s26, 0
      %p99 = por %p97, %p98
      %p100 = scmp.ne.s32.totalorder %s86, %s87
      %p101 = scmp.eq.s32.totalorder %s27, 1
      %p102 = por %p100, %p101
      %p104 = scmp.ne.s32.totalorder %s87, %s103
      %p105 = scmp.eq.s32.totalorder %s27, 0
      %p106 = por %p104, %p105
      %s107 = ssub.s32 %s21, %s28
      %p108 = scmp.eq.s32.totalorder %s107, 0
      %s110 = sadd.s32 %s109, 1
      %s111 = scalar_select %p108, %s109, %s110
      %p114 = pneg %p108
      %p115 = scmp.eq.s32.totalorder %s21, 1
      %p116 = por %p114, %p115
      %p117 = scmp.ne.s32.totalorder %s109, %s112
      %p118 = scmp.eq.s32.totalorder %s21, 0
      %p119 = por %p117, %p118
      %p120 = scmp.ne.s32.totalorder %s109, %s112
      %p121 = scmp.eq.s32.totalorder %s26, 1
      %p122 = por %p120, %p121
      %p123 = scmp.ne.s32.totalorder %s112, %s113
      %p124 = scmp.eq.s32.totalorder %s26, 0
      %p125 = por %p123, %p124
      %p126 = scmp.ne.s32.totalorder %s112, %s113
      %p127 = scmp.eq.s32.totalorder %s27, 1
      %p128 = por %p126, %p127
      %p130 = scmp.ne.s32.totalorder %s113, %s129
      %p131 = scmp.eq.s32.totalorder %s27, 0
      %p132 = por %p130, %p131
      %s134 = sadd.s32 %s133, 1
      %p137 = scmp.eq.s32.totalorder %s21, 1
      %p138 = scmp.ne.s32.totalorder %s133, %s135
      %p139 = scmp.eq.s32.totalorder %s21, 0
      %p140 = por %p138, %p139
      %p141 = scmp.ne.s32.totalorder %s133, %s135
      %p142 = scmp.eq.s32.totalorder %s26, 1
      %p143 = por %p141, %p142
      %p144 = scmp.ne.s32.totalorder %s135, %s136
      %p145 = scmp.eq.s32.totalorder %s26, 0
      %p146 = por %p144, %p145
      %p147 = scmp.ne.s32.totalorder %s135, %s136
      %p148 = scmp.eq.s32.totalorder %s27, 1
      %p149 = por %p147, %p148
      %p151 = scmp.ne.s32.totalorder %s136, %s150
      %p152 = scmp.eq.s32.totalorder %s27, 0
      %p153 = por %p151, %p152
      %s155 = sadd.s32 %s154, 1
      %p158 = scmp.eq.s32.totalorder %s21, 1
      %p159 = scmp.ne.s32.totalorder %s154, %s156
      %p160 = scmp.eq.s32.totalorder %s21, 0
      %p161 = por %p159, %p160
      %p162 = scmp.ne.s32.totalorder %s154, %s156
      %p163 = scmp.eq.s32.totalorder %s26, 1
      %p164 = por %p162, %p163
      %p165 = scmp.ne.s32.totalorder %s156, %s157
      %p166 = scmp.eq.s32.totalorder %s26, 0
      %p167 = por %p165, %p166
      %p168 = scmp.ne.s32.totalorder %s156, %s157
      %p169 = scmp.eq.s32.totalorder %s27, 1
      %p170 = por %p168, %p169
      %p172 = scmp.ne.s32.totalorder %s157, %s171
      %p173 = scmp.eq.s32.totalorder %s27, 0
      %p174 = por %p172, %p173
      %s176 = sadd.s32 %s175, 1
      %p179 = scmp.eq.s32.totalorder %s21, 1
      %p180 = scmp.ne.s32.totalorder %s175, %s177
      %p181 = scmp.eq.s32.totalorder %s21, 0
      %p182 = por %p180, %p181
      %p183 = scmp.ne.s32.totalorder %s175, %s177
      %p184 = scmp.eq.s32.totalorder %s26, 1
      %p185 = por %p183, %p184
      %p186 = scmp.ne.s32.totalorder %s177, %s178
      %p187 = scmp.eq.s32.totalorder %s26, 0
      %p188 = por %p186, %p187
      %p189 = scmp.ne.s32.totalorder %s177, %s178
      %p190 = scmp.eq.s32.totalorder %s27, 1
      %p191 = por %p189, %p190
      %p193 = scmp.ne.s32.totalorder %s178, %s192
      %p194 = scmp.eq.s32.totalorder %s27, 0
      %p195 = por %p193, %p194
      %s197 = sadd.s32 %s196, 1
      %p200 = scmp.eq.s32.totalorder %s21, 1
      %p201 = scmp.ne.s32.totalorder %s196, %s198
      %p202 = scmp.eq.s32.totalorder %s21, 0
      %p203 = por %p201, %p202
      %p204 = scmp.ne.s32.totalorder %s196, %s198
      %p205 = scmp.eq.s32.totalorder %s26, 1
      %p206 = por %p204, %p205
      %p207 = scmp.ne.s32.totalorder %s198, %s199
      %p208 = scmp.eq.s32.totalorder %s26, 0
      %p209 = por %p207, %p208
      %p210 = scmp.ne.s32.totalorder %s198, %s199
      %p211 = scmp.eq.s32.totalorder %s27, 1
      %p212 = por %p210, %p211
      %p214 = scmp.ne.s32.totalorder %s199, %s213
      %p215 = scmp.eq.s32.totalorder %s27, 0
      %p216 = por %p214, %p215
      %s217 = ssub.s32 %s21, %s28
      %p218 = scmp.eq.s32.totalorder %s217, 0
      %s220 = sadd.s32 %s219, 1
      %s221 = scalar_select %p218, %s219, %s220
      %p224 = pneg %p218
      %p225 = scmp.eq.s32.totalorder %s21, 1
      %p226 = por %p224, %p225
      %p227 = scmp.ne.s32.totalorder %s219, %s222
      %p228 = scmp.eq.s32.totalorder %s21, 0
      %p229 = por %p227, %p228
      %p230 = scmp.ne.s32.totalorder %s219, %s222
      %p231 = scmp.eq.s32.totalorder %s26, 1
      %p232 = por %p230, %p231
      %p233 = scmp.ne.s32.totalorder %s222, %s223
      %p234 = scmp.eq.s32.totalorder %s26, 0
      %p235 = por %p233, %p234
      %p236 = scmp.ne.s32.totalorder %s222, %s223
      %p237 = scmp.eq.s32.totalorder %s27, 1
      %p238 = por %p236, %p237
      %p240 = scmp.ne.s32.totalorder %s223, %s239
      %p241 = scmp.eq.s32.totalorder %s27, 0
      %p242 = por %p240, %p241
      %p243 = scmp.le.s32.totalorder 1, %s21
      %p244 = scmp.lt.s32.totalorder %s21, 3
      %p245 = pnand %p243, %p244
      %p246 = pneg %p245
      // Predicated region
      $region9: #{tri_attention.1} parent=5 // pred_check
        _
      $region10: #{tri_attention.1} parent=5 // pred_check_branch
        %248 = sbr.rel (%p245) target = $region12
      $region11: #{tri_attention.1} parent=5 // pred_region
        %s249 = ssub.s32 %s21, 1
        // Predicated region
        $region13: #{tri_attention.1} parent=11 // pred_check
          %p250 = pneg %p146
        $region14: #{tri_attention.1} parent=11 // pred_check_branch
          %252 = sbr.rel (%p250) target = $region16
        $region15: #{tri_attention.1} parent=11 // pred_region
          _
        $region16: #{tri_attention.1} parent=11 // pred_fallthru
          _
        // Predicated region
        $region17: #{tri_attention.1} parent=11 // pred_check
          %p253 = pneg %p167
        $region18: #{tri_attention.1} parent=11 // pred_check_branch
          %255 = sbr.rel (%p253) target = $region20
        $region19: #{tri_attention.1} parent=11 // pred_region
          _
        $region20: #{tri_attention.1} parent=11 // pred_fallthru
          _
        // Predicated region
        $region21: #{tri_attention.1} parent=11 // pred_check
          %p256 = pneg %p188
        $region22: #{tri_attention.1} parent=11 // pred_check_branch
          %258 = sbr.rel (%p256) target = $region24
        $region23: #{tri_attention.1} parent=11 // pred_region
          _
        $region24: #{tri_attention.1} parent=11 // pred_fallthru
          _
        // Predicated region
        $region25: #{tri_attention.1} parent=11 // pred_check
          %p259 = pneg %p209
        $region26: #{tri_attention.1} parent=11 // pred_check_branch
          %261 = sbr.rel (%p259) target = $region28
        $region27: #{tri_attention.1} parent=11 // pred_region
          _
        $region28: #{tri_attention.1} parent=11 // pred_fallthru
          _
      $region12: #{tri_attention.1} parent=5 // pred_fallthru
        _
      %p262 = scmp.lt.s32.totalorder %s21, 2
      // Predicated region
      $region29: #{tri_attention.1} parent=5 // pred_check
        %p263 = pneg %p262
      $region30: #{tri_attention.1} parent=5 // pred_check_branch
        %265 = sbr.rel (%p263) target = $region32
      $region31: #{tri_attention.1} parent=5 // pred_region
        // Predicated region
        $region33: #{tri_attention.1} parent=31 // pred_check
          %p266 = pneg %p41
        $region34: #{tri_attention.1} parent=31 // pred_check_branch
          %268 = sbr.rel (%p266) target = $region36
        $region35: #{tri_attention.1} parent=31 // pred_region
          %p269 = scmp.lt.s32.totalorder %s21, 1
          %s270 = scalar_select %p269, %s21, 1
          %s271 = smul.addr %s270, 2
          %s272 = smul.addr %s271, 8
          %s273 = scalar_lea.vmem %s0, %s272
        $region36: #{tri_attention.1} parent=31 // pred_fallthru
          _
        // Predicated region
        $region37: #{tri_attention.1} parent=31 // pred_check
          %p274 = pneg %p67
        $region38: #{tri_attention.1} parent=31 // pred_check_branch
          %276 = sbr.rel (%p274) target = $region40
        $region39: #{tri_attention.1} parent=31 // pred_region
          %s277 = sand.u32 %s57, 1
          %s278 = scalar_lea.sflag [#allocation4], %s277
          %s279 = sand.u32 %s57, 1
          %s280 = smul.addr %s279, 8
          %s281 = scalar_lea.vmem [#allocation3], %s280
          %s283 = ssub.s32 128, 128
          %284 = vsyncadd %s278, %s283
          %s285 = smul.addr %s21, 128
          %s286 = scalar_lea.hbm %s1, %s285
          %s288 = sshll.u32 %s281, 4
          %s289 = int_to_ptr.vmem [resolvable:$true] %s288
          %291 = dma.hbm_to_vmem [thread:$0]  %s286, 128, %s289, %s278
        $region40: #{tri_attention.1} parent=31 // pred_fallthru
          _
        // Predicated region
        $region41: #{tri_attention.1} parent=31 // pred_check
          %p292 = pneg %p93
        $region42: #{tri_attention.1} parent=31 // pred_check_branch
          %294 = sbr.rel (%p292) target = $region44
        $region43: #{tri_attention.1} parent=31 // pred_region
          %p295 = scmp.lt.s32.totalorder %s21, 1
          %s296 = scalar_select %p295, %s21, 1
          %s297 = smul.addr %s296, 2
          %s298 = smul.addr %s297, 8
          %s299 = scalar_lea.vmem %s2, %s298
        $region44: #{tri_attention.1} parent=31 // pred_fallthru
          _
        // Predicated region
        $region45: #{tri_attention.1} parent=31 // pred_check
          %p300 = pneg %p119
        $region46: #{tri_attention.1} parent=31 // pred_check_branch
          %302 = sbr.rel (%p300) target = $region48
        $region47: #{tri_attention.1} parent=31 // pred_region
          %p303 = scmp.lt.s32.totalorder %s21, 1
          %s304 = scalar_select %p303, %s21, 1
          %s305 = scalar_lea.vmem %s3, %s304
        $region48: #{tri_attention.1} parent=31 // pred_fallthru
          _
      $region32: #{tri_attention.1} parent=5 // pred_fallthru
        _
      %p306 = scmp.le.s32.totalorder 1, %s21
      %p307 = scmp.lt.s32.totalorder %s21, 3
      %p308 = pnand %p306, %p307
      %p309 = pneg %p308
      // Predicated region
      $region49: #{tri_attention.1} parent=5 // pred_check
        _
      $region50: #{tri_attention.1} parent=5 // pred_check_branch
        %311 = sbr.rel (%p308) target = $region52
      $region51: #{tri_attention.1} parent=5 // pred_region
        %s312 = ssub.s32 %s21, 1
        %s313 = sand.u32 %s60, 1
        %s314 = scalar_lea.sflag [#allocation4], %s313
        %s315 = sand.u32 %s60, 1
        %s316 = smul.addr %s315, 8
        %s317 = scalar_lea.vmem [#allocation3], %s316
        // Predicated region
        $region53: #{tri_attention.1} parent=51 // pred_check
          %p318 = pneg %p73
        $region54: #{tri_attention.1} parent=51 // pred_check_branch
          %320 = sbr.rel (%p318) target = $region56
        $region55: #{tri_attention.1} parent=51 // pred_region
          %321 = dma.done %s314, 128
        $region56: #{tri_attention.1} parent=51 // pred_fallthru
          _
        %p322 = scmp.lt.s32.totalorder %s26, 1
        %s323 = scalar_select %p322, %s26, 1
        %s324 = smul.addr %s323, 2
        %s325 = smul.addr %s324, 8
        %s326 = scalar_lea.vmem %s0, %s325
        %p327 = pneg %p47
        %p328 = pneg %p44
        %s329 = sand.u32 %s60, 1
        %s330 = scalar_lea.sflag [#allocation4], %s329
        %s331 = sand.u32 %s60, 1
        %s332 = smul.addr %s331, 8
        %s333 = scalar_lea.vmem [#allocation3], %s332
        %p334 = pneg %p73
        %p335 = pneg %p70
        %p336 = scmp.lt.s32.totalorder %s26, 1
        %s337 = scalar_select %p336, %s26, 1
        %s338 = smul.addr %s337, 2
        %s339 = smul.addr %s338, 8
        %s340 = scalar_lea.vmem %s2, %s339
        %p341 = pneg %p99
        %p342 = pneg %p96
        %p343 = scmp.lt.s32.totalorder %s26, 1
        %s344 = scalar_select %p343, %s26, 1
        %s345 = scalar_lea.vmem %s3, %s344
        %p346 = pneg %p125
        %p347 = pneg %p122
        %p348 = pneg %p146
        %p349 = pneg %p143
        %p350 = pneg %p167
        %p351 = pneg %p164
        %p352 = pneg %p188
        %p353 = pneg %p185
        %p354 = pneg %p209
        %p355 = pneg %p206
        %p356 = pneg %p235
        %p357 = pneg %p232
        %s358 = sand.u32 %s222, 1
        %s359 = scalar_lea.sflag [#allocation5], %s358
        %s360 = sand.u32 %s222, 1
        %s361 = smul.addr %s360, 16
        %s362 = scalar_lea.vmem [#allocation6], %s361
        %p363 = scmp.lt.s32.totalorder %s26, 1
        %s364 = scalar_select %p363, %s26, 1
        %s365 = smul.addr %s364, 2
        %s366 = smul.addr %s365, 8
        %s367 = scalar_lea.vmem %s0, %s366
        %p368 = scmp.lt.s32.totalorder %s26, 1
        %s369 = scalar_select %p368, %s26, 1
        %s370 = smul.addr %s369, 2
        %s371 = smul.addr %s370, 8
        %s372 = scalar_lea.vmem %s2, %s371
        %p373 = scmp.lt.s32.totalorder %s26, 1
        %s374 = scalar_select %p373, %s26, 1
        %s375 = scalar_lea.vmem %s3, %s374
        %v377 = vld [vmem:[%s367] sm:$0xff]
        %v378 = vld [vmem:[%s367 + $0x8] sm:$0xff]
        %v379 = vld [vmem:[%s317] sm:$0xff]
        %v380 = vld [vmem:[%s372] sm:$0xff]
        %v381 = vld [vmem:[%s372 + $0x8] sm:$0xff]
        %vm382 = vcmp.ne.f32.partialorder %v380, 0.0
        %vm383 = vcmp.ne.f32.partialorder %v381, 0.0
        %v384 = vld [vmem:[%s375] sm:$0x1]
        %vm385 = vcmp.ne.f32.partialorder %v384, 0.0
        %v386 = vld [vmem:[%s4] sm:$0x1]
        %v387 = vld [vmem:[%s5] sm:$0x1]
        %v388 = vld [vmem:[%s6] sm:$0x1]
        %s389 = sld [smem:[#allocation2]]
        %v390 = vsel %vm382, 1, 0
        %v391 = vsel %vm383, 1, 0
        %392 = vset.pattern.permute.xlu0 0
        %393 = vperm.xlu0 %392, %v390
        %v394 = vpop.permute.xlu0 %393
        %395 = vset.pattern.permute.xlu0 0
        %396 = vperm.xlu0 %395, %v391
        %v397 = vpop.permute.xlu0 %396
        %vm398 = vcmp.eq.s32.totalorder %v394, 1
        %vm399 = vcmp.eq.s32.totalorder %v397, 1
        %v400 = vsel %vm398, %v377, -1e+30
        %v401 = vsel %vm399, %v378, -1e+30
        %vm402 = vcmask 261120
        %403 = vst.msk [vmem:[%s362] sm:$0xff] %vm402, %v400
        %404 = vst.msk [vmem:[%s362 + $0x8] sm:$0xff] %vm402, %v401
        %v406 = vlaneseq
        %v407 = vshrl.u32 %v406, 7
        %v408 = vsub.s32 0, %v407
        %v409 = vrot.slane %v386, %v408
        %v411 = vmul.f32 %v377, %v409
        %v412 = vmul.f32 %v378, %v409
        %v413 = vsel %vm402, %v411, 0.0
        %414 = vadd.xlane.f32.xlu0 %v413
        %v415 = vpop.xlane.xlu0 %414
        %v416 = vsel %vm402, %v412, 0.0
        %417 = vadd.xlane.f32.xlu0 %v416
        %v418 = vpop.xlane.xlu0 %417
        %v419 = vstv %s389
        %v420 = vadd.f32 %v415, %v419
        %v421 = vadd.f32 %v418, %v419
        %v423 = vsel %vm402, %v387, 0
        %v426 = vsel %vm402, %v379, 0
        %428 = vmatprep.subr.mxu0 0.0
        %429 = vmatpush1.xpose.msra.mxu0 0.0
        %430 = vmatprep.subr.mxu0 0.0
        %431 = vmatpush1.xpose.msra.mxu0 0.0
        %432 = vmatprep.subr.mxu0 0.0
        %433 = vmatpush1.xpose.msra.mxu0 0.0
        %434 = vmatprep.subr.mxu0 0.0
        %435 = vmatpush1.xpose.msra.mxu0 0.0
        %436 = vmatprep.subr.mxu0 0.0
        %437 = vmatpush1.xpose.msra.mxu0 0.0
        %438 = vmatprep.subr.mxu0 0.0
        %439 = vmatpush1.xpose.msra.mxu0 0.0
        %440 = vmatprep.subr.mxu0 0.0
        %441 = vmatpush1.xpose.msra.mxu0 0.0
        %442 = vmatprep.subr.mxu0 0.0
        %443 = vmatpush1.xpose.msra.mxu0 0.0
        %444 = vmatprep.subr.mxu0 0.0
        %445 = vmatpush1.xpose.msra.mxu0 0.0
        %446 = vmatprep.subr.mxu0 0.0
        %447 = vmatpush1.xpose.msra.mxu0 0.0
        %448 = vmatprep.subr.mxu0 0.0
        %449 = vmatpush1.xpose.msra.mxu0 0.0
        %450 = vmatprep.subr.mxu0 0.0
        %451 = vmatpush1.xpose.msra.mxu0 0.0
        %452 = vmatprep.subr.mxu0 0.0
        %453 = vmatpush1.xpose.msra.mxu0 0.0
        %454 = vmatprep.subr.mxu0 0.0
        %455 = vmatpush1.xpose.msra.mxu0 0.0
        %456 = vmatprep.subr.mxu0 0.0
        %457 = vmatpush1.xpose.msra.mxu0 0.0
        %458 = vmatprep.subr.mxu0 0.0
        %459 = vmatpush1.xpose.msra.mxu0 %v426
        %460 = vmatprep.subr.mxu0 0.0
        %461 = vmatpush2.xpose.msra.mxu0 0.0
        %462 = vmatprep.subr.mxu0 0.0
        %463 = vmatpush2.xpose.msra.mxu0 0.0
        %464 = vmatprep.subr.mxu0 0.0
        %465 = vmatpush2.xpose.msra.mxu0 0.0
        %466 = vmatprep.subr.mxu0 0.0
        %467 = vmatpush2.xpose.msra.mxu0 0.0
        %468 = vmatprep.subr.mxu0 0.0
        %469 = vmatpush2.xpose.msra.mxu0 0.0
        %470 = vmatprep.subr.mxu0 0.0
        %471 = vmatpush2.xpose.msra.mxu0 0.0
        %472 = vmatprep.subr.mxu0 0.0
        %473 = vmatpush2.xpose.msra.mxu0 0.0
        %474 = vmatprep.subr.mxu0 0.0
        %475 = vmatpush2.xpose.msra.mxu0 0.0
        %476 = vmatprep.subr.mxu0 0.0
        %477 = vmatpush2.xpose.msra.mxu0 0.0
        %478 = vmatprep.subr.mxu0 0.0
        %479 = vmatpush2.xpose.msra.mxu0 0.0
        %480 = vmatprep.subr.mxu0 0.0
        %481 = vmatpush2.xpose.msra.mxu0 0.0
        %482 = vmatprep.subr.mxu0 0.0
        %483 = vmatpush2.xpose.msra.mxu0 0.0
        %484 = vmatprep.subr.mxu0 0.0
        %485 = vmatpush2.xpose.msra.mxu0 0.0
        %486 = vmatprep.subr.mxu0 0.0
        %487 = vmatpush2.xpose.msra.mxu0 0.0
        %488 = vmatprep.subr.mxu0 0.0
        %489 = vmatpush2.xpose.msra.mxu0 0.0
        %490 = vmatprep.subr.mxu0 0.0
        %491 = vmatpush2.xpose.msra.mxu0 0.0
        %492 = vmatprep.mubr.f32.mxu0 0.0
        %493 = vmatmul.mubr.f32.gmra.mxu0 %v423
        %v494 = vpop.f32.mrf.mxu0
        %v495 = vadd.f32 0.0, %v494
        %v496 = vpop.f32.mrf.mxu0
        %497 = vdwg.mxu0
        %v499 = vlaneseq
        %v500 = vshrl.u32 %v499, 7
        %v501 = vsub.s32 0, %v500
        %v502 = vrot.slane %v388, %v501
        %v504 = vmul.f32 %v377, %v502
        %v505 = vmul.f32 %v378, %v502
        %v507 = vsel %vm402, %v504, 0
        %v510 = vsel %vm402, %v505, 0
        %512 = vmatprep.subr.mxu0 0.0
        %513 = vmatpush1.xpose.msra.mxu0 0.0
        %514 = vmatprep.subr.mxu0 0.0
        %515 = vmatpush1.xpose.msra.mxu0 0.0
        %516 = vmatprep.subr.mxu0 0.0
        %517 = vmatpush1.xpose.msra.mxu0 0.0
        %518 = vmatprep.subr.mxu0 0.0
        %519 = vmatpush1.xpose.msra.mxu0 0.0
        %520 = vmatprep.subr.mxu0 0.0
        %521 = vmatpush1.xpose.msra.mxu0 0.0
        %522 = vmatprep.subr.mxu0 0.0
        %523 = vmatpush1.xpose.msra.mxu0 0.0
        %524 = vmatprep.subr.mxu0 0.0
        %525 = vmatpush1.xpose.msra.mxu0 0.0
        %526 = vmatprep.subr.mxu0 0.0
        %527 = vmatpush1.xpose.msra.mxu0 0.0
        %528 = vmatprep.subr.mxu0 0.0
        %529 = vmatpush1.xpose.msra.mxu0 0.0
        %530 = vmatprep.subr.mxu0 0.0
        %531 = vmatpush1.xpose.msra.mxu0 0.0
        %532 = vmatprep.subr.mxu0 0.0
        %533 = vmatpush1.xpose.msra.mxu0 0.0
        %534 = vmatprep.subr.mxu0 0.0
        %535 = vmatpush1.xpose.msra.mxu0 0.0
        %536 = vmatprep.subr.mxu0 0.0
        %537 = vmatpush1.xpose.msra.mxu0 0.0
        %538 = vmatprep.subr.mxu0 0.0
        %539 = vmatpush1.xpose.msra.mxu0 0.0
        %540 = vmatprep.subr.mxu0 0.0
        %541 = vmatpush1.xpose.msra.mxu0 0.0
        %542 = vmatprep.subr.mxu0 0.0
        %543 = vmatpush1.xpose.msra.mxu0 %v426
        %544 = vmatprep.subr.mxu0 0.0
        %545 = vmatpush2.xpose.msra.mxu0 0.0
        %546 = vmatprep.subr.mxu0 0.0
        %547 = vmatpush2.xpose.msra.mxu0 0.0
        %548 = vmatprep.subr.mxu0 0.0
        %549 = vmatpush2.xpose.msra.mxu0 0.0
        %550 = vmatprep.subr.mxu0 0.0
        %551 = vmatpush2.xpose.msra.mxu0 0.0
        %552 = vmatprep.subr.mxu0 0.0
        %553 = vmatpush2.xpose.msra.mxu0 0.0
        %554 = vmatprep.subr.mxu0 0.0
        %555 = vmatpush2.xpose.msra.mxu0 0.0
        %556 = vmatprep.subr.mxu0 0.0
        %557 = vmatpush2.xpose.msra.mxu0 0.0
        %558 = vmatprep.subr.mxu0 0.0
        %559 = vmatpush2.xpose.msra.mxu0 0.0
        %560 = vmatprep.subr.mxu0 0.0
        %561 = vmatpush2.xpose.msra.mxu0 0.0
        %562 = vmatprep.subr.mxu0 0.0
        %563 = vmatpush2.xpose.msra.mxu0 0.0
        %564 = vmatprep.subr.mxu0 0.0
        %565 = vmatpush2.xpose.msra.mxu0 0.0
        %566 = vmatprep.subr.mxu0 0.0
        %567 = vmatpush2.xpose.msra.mxu0 0.0
        %568 = vmatprep.subr.mxu0 0.0
        %569 = vmatpush2.xpose.msra.mxu0 0.0
        %570 = vmatprep.subr.mxu0 0.0
        %571 = vmatpush2.xpose.msra.mxu0 0.0
        %572 = vmatprep.subr.mxu0 0.0
        %573 = vmatpush2.xpose.msra.mxu0 0.0
        %574 = vmatprep.subr.mxu0 0.0
        %575 = vmatpush2.xpose.msra.mxu0 0.0
        %576 = vmatprep.mubr.f32.mxu0 0.0
        %577 = vmatmul.mubr.f32.gmra.mxu0 %v507
        %v578 = vpop.f32.mrf.mxu0
        %v579 = vadd.f32 %v420, %v578
        %v580 = vpop.f32.mrf.mxu0
        %581 = vmatprep.mubr.f32.mxu0 0.0
        %582 = vmatmul.mubr.f32.gmra.mxu0 %v510
        %v583 = vpop.f32.mrf.mxu0
        %v584 = vadd.f32 %v421, %v583
        %v585 = vpop.f32.mrf.mxu0
        %586 = vdwg.mxu0
        %v587 = vlaneseq
        %v588 = vshrl.u32 %v587, 7
        %v589 = vsub.s32 0, %v588
        %v590 = vrot.slane %v495, %v589
        %v591 = vadd.f32 %v579, %v590
        %v592 = vadd.f32 %v584, %v590
        %v593 = vsel %vm385, 1, 0
        %v594 = vlaneseq
        %v595 = vshrl.u32 %v594, 7
        %v596 = vsub.s32 0, %v595
        %v597 = vrot.slane %v593, %v596
        %vm598 = vcmp.eq.s32.totalorder %v597, 1
        %v599 = vsel %vm598, %v591, -1e+30
        %v600 = vsel %vm598, %v592, -1e+30
        %v601 = vsel %vm398, %v599, -1e+30
        %v602 = vsel %vm399, %v600, -1e+30
        %vm603 = vcmask 64512
        %v604 = vsel %vm603, %v601, -inf
        %605 = vmax.xlane.f32.xlu0 %v604
        %v606 = vpop.xlane.xlu0 %605
        %v607 = vsel %vm603, %v602, -inf
        %608 = vmax.xlane.f32.xlu0 %v607
        %v609 = vpop.xlane.xlu0 %608
        %v610 = vsub.f32 %v601, %v606
        %v611 = vsub.f32 %v602, %v609
        %v612 = vmul.f32 %v610, 1.442695
        %v613 = vpow.pop %v612
        %v614 = vmul.f32 %v611, 1.442695
        %v615 = vpow.pop %v614
        %v616 = vsel %vm603, %v613, 0.0
        %617 = vadd.xlane.f32.xlu0 %v616
        %v618 = vpop.xlane.xlu0 %617
        %v619 = vsel %vm603, %v615, 0.0
        %620 = vadd.xlane.f32.xlu0 %v619
        %v621 = vpop.xlane.xlu0 %620
        %v622 = vrcp.pop %v618
        %v623 = vrcp.pop %v621
        %v624 = vmax.f32 %v604, %v607
        %v625 = vrot.slane %v624, 4
        %v626 = vmax.f32 %v624, %v625
        %v627 = vrot.slane %v626, 2
        %v628 = vmax.f32 %v626, %v627
        %v629 = vrot.slane %v628, 1
        %v630 = vmax.f32 %v628, %v629
        %v631 = vsub.f32 %v601, %v630
        %v632 = vsub.f32 %v602, %v630
        %v633 = vmul.f32 %v631, 1.442695
        %v634 = vpow.pop %v633
        %v635 = vmul.f32 %v632, 1.442695
        %v636 = vpow.pop %v635
        %v637 = vsel %vm603, %v634, 0.0
        %v638 = vsel %vm603, %v636, 0.0
        %v639 = vadd.f32 %v637, %v638
        %v640 = vrot.slane %v639, 4
        %v641 = vadd.f32 %v639, %v640
        %v642 = vrot.slane %v641, 2
        %v643 = vadd.f32 %v641, %v642
        %v644 = vrot.slane %v643, 1
        %v645 = vadd.f32 %v643, %v644
        %v646 = vrcp.pop %v645
        %v647 = vmul.f32 %v634, %v646
        %v648 = vmul.f32 %v636, %v646
        %v649 = vpack.c.bf16 %v615, %v613
        %v650 = vpack.c.bf16 %v379, %v379
        %v652 = vsel %vm603, %v649, 0
        %vm654 = vcmask 1043456
        %v656 = vsel %vm654, %v650, 0
        %658 = vmatprep.subr.bf16.mxu0 0
        %659 = vmatpush1.bf16.msra.mxu0 0
        %660 = vmatprep.subr.bf16.mxu0 0
        %661 = vmatpush1.bf16.msra.mxu0 0
        %662 = vmatprep.subr.bf16.mxu0 0
        %663 = vmatpush1.bf16.msra.mxu0 0
        %664 = vmatprep.subr.bf16.mxu0 0
        %665 = vmatpush1.bf16.msra.mxu0 0
        %666 = vmatprep.subr.bf16.mxu0 0
        %667 = vmatpush1.bf16.msra.mxu0 0
        %668 = vmatprep.subr.bf16.mxu0 0
        %669 = vmatpush1.bf16.msra.mxu0 0
        %670 = vmatprep.subr.bf16.mxu0 0
        %671 = vmatpush1.bf16.msra.mxu0 0
        %672 = vmatprep.subr.bf16.mxu0 0
        %673 = vmatpush1.bf16.msra.mxu0 %v656
        %674 = vmatprep.subr.bf16.mxu0 0
        %675 = vmatpush2.bf16.msra.mxu0 0
        %676 = vmatprep.subr.bf16.mxu0 0
        %677 = vmatpush2.bf16.msra.mxu0 0
        %678 = vmatprep.subr.bf16.mxu0 0
        %679 = vmatpush2.bf16.msra.mxu0 0
        %680 = vmatprep.subr.bf16.mxu0 0
        %681 = vmatpush2.bf16.msra.mxu0 0
        %682 = vmatprep.subr.bf16.mxu0 0
        %683 = vmatpush2.bf16.msra.mxu0 0
        %684 = vmatprep.subr.bf16.mxu0 0
        %685 = vmatpush2.bf16.msra.mxu0 0
        %686 = vmatprep.subr.bf16.mxu0 0
        %687 = vmatpush2.bf16.msra.mxu0 0
        %688 = vmatprep.subr.bf16.mxu0 0
        %689 = vmatpush2.bf16.msra.mxu0 0
        %690 = vmatprep.mubr.bf16.mxu0 0
        %691 = vmatmul.mubr.bf16.gmra.mxu0 %v652
        %v692 = vpop.f32.mrf.mxu0
        %v693 = vadd.f32 0.0, %v692
        %v694 = vpop.f32.mrf.mxu0
        %v695 = vpop.f32.mrf.mxu0
        %v696 = vadd.f32 0.0, %v695
        %v697 = vpop.f32.mrf.mxu0
        %698 = vdwg.mxu0
        %v699 = vmul.f32 %v693, %v622
        %v700 = vmul.f32 %v696, %v623
        %v701 = vpack.c.bf16 %v648, %v647
        %v702 = vpack.c.bf16 %v378, %v377
        %703 = vxpose.xlu0.c.b16.start [1/8] %v701, 128
        %704 = vxpose.xlu0.c.b16.cont [2/8] 0, 128
        %705 = vxpose.xlu0.c.b16.cont [3/8] 0, 128
        %706 = vxpose.xlu0.c.b16.cont [4/8] 0, 128
        %707 = vxpose.xlu0.c.b16.cont [5/8] 0, 128
        %708 = vxpose.xlu0.c.b16.cont [6/8] 0, 128
        %709 = vxpose.xlu0.c.b16.cont [7/8] 0, 128
        %710 = vxpose.xlu0.c.b16.end [8/8] 0, 128
        %v711 = vpop.trf.xlu0
        %v712 = vpop.trf.xlu0
        %v713 = vpop.trf.xlu0
        %v714 = vpop.trf.xlu0
        %v715 = vpop.trf.xlu0
        %v716 = vpop.trf.xlu0
        %v717 = vpop.trf.xlu0
        %v718 = vpop.trf.xlu0
        %vm719 = vcmask 130048
        %v721 = vsel %vm719, %v711, 0
        %723 = vmatprep.subr.bf16.mxu0 0
        %724 = vmatpush1.bf16.msra.mxu0 0
        %725 = vmatprep.subr.bf16.mxu0 0
        %726 = vmatpush1.bf16.msra.mxu0 0
        %727 = vmatprep.subr.bf16.mxu0 0
        %728 = vmatpush1.bf16.msra.mxu0 0
        %729 = vmatprep.subr.bf16.mxu0 0
        %730 = vmatpush1.bf16.msra.mxu0 0
        %731 = vmatprep.subr.bf16.mxu0 0
        %732 = vmatpush1.bf16.msra.mxu0 0
        %733 = vmatprep.subr.bf16.mxu0 0
        %734 = vmatpush1.bf16.msra.mxu0 0
        %735 = vmatprep.subr.bf16.mxu0 0
        %736 = vmatpush1.bf16.msra.mxu0 0
        %737 = vmatprep.subr.bf16.mxu0 0
        %738 = vmatpush1.bf16.msra.mxu0 %v702
        %739 = vmatprep.subr.bf16.mxu0 0
        %740 = vmatpush2.bf16.msra.mxu0 0
        %741 = vmatprep.subr.bf16.mxu0 0
        %742 = vmatpush2.bf16.msra.mxu0 0
        %743 = vmatprep.subr.bf16.mxu0 0
        %744 = vmatpush2.bf16.msra.mxu0 0
        %745 = vmatprep.subr.bf16.mxu0 0
        %746 = vmatpush2.bf16.msra.mxu0 0
        %747 = vmatprep.subr.bf16.mxu0 0
        %748 = vmatpush2.bf16.msra.mxu0 0
        %749 = vmatprep.subr.bf16.mxu0 0
        %750 = vmatpush2.bf16.msra.mxu0 0
        %751 = vmatprep.subr.bf16.mxu0 0
        %752 = vmatpush2.bf16.msra.mxu0 0
        %753 = vmatprep.subr.bf16.mxu0 0
        %754 = vmatpush2.bf16.msra.mxu0 0
        %755 = vmatprep.mubr.bf16.mxu0 0
        %756 = vmatmul.mubr.bf16.gmra.mxu0 %v721
        %v757 = vpop.f32.mrf.mxu0
        %v758 = vadd.f32 0.0, %v757
        %v759 = vpop.f32.mrf.mxu0
        %v760 = vpop.f32.mrf.mxu0
        %v761 = vpop.f32.mrf.mxu0
        %762 = vdwg.mxu0
        %v763 = vpack.c.bf16 %v758, %v758
        %v765 = vsel %vm654, %v763, 0
        %767 = vmatprep.subr.bf16.mxu0 0
        %768 = vmatpush1.bf16.msra.mxu0 0
        %769 = vmatprep.subr.bf16.mxu0 0
        %770 = vmatpush1.bf16.msra.mxu0 0
        %771 = vmatprep.subr.bf16.mxu0 0
        %772 = vmatpush1.bf16.msra.mxu0 0
        %773 = vmatprep.subr.bf16.mxu0 0
        %774 = vmatpush1.bf16.msra.mxu0 0
        %775 = vmatprep.subr.bf16.mxu0 0
        %776 = vmatpush1.bf16.msra.mxu0 0
        %777 = vmatprep.subr.bf16.mxu0 0
        %778 = vmatpush1.bf16.msra.mxu0 0
        %779 = vmatprep.subr.bf16.mxu0 0
        %780 = vmatpush1.bf16.msra.mxu0 0
        %781 = vmatprep.subr.bf16.mxu0 0
        %782 = vmatpush1.bf16.msra.mxu0 %v765
        %783 = vmatprep.subr.bf16.mxu0 0
        %784 = vmatpush2.bf16.msra.mxu0 0
        %785 = vmatprep.subr.bf16.mxu0 0
        %786 = vmatpush2.bf16.msra.mxu0 0
        %787 = vmatprep.subr.bf16.mxu0 0
        %788 = vmatpush2.bf16.msra.mxu0 0
        %789 = vmatprep.subr.bf16.mxu0 0
        %790 = vmatpush2.bf16.msra.mxu0 0
        %791 = vmatprep.subr.bf16.mxu0 0
        %792 = vmatpush2.bf16.msra.mxu0 0
        %793 = vmatprep.subr.bf16.mxu0 0
        %794 = vmatpush2.bf16.msra.mxu0 0
        %795 = vmatprep.subr.bf16.mxu0 0
        %796 = vmatpush2.bf16.msra.mxu0 0
        %797 = vmatprep.subr.bf16.mxu0 0
        %798 = vmatpush2.bf16.msra.mxu0 0
        %799 = vmatprep.mubr.bf16.mxu0 0
        %800 = vmatmul.mubr.bf16.gmra.mxu0 %v652
        %v801 = vpop.f32.mrf.mxu0
        %v802 = vadd.f32 0.0, %v801
        %v803 = vpop.f32.mrf.mxu0
        %v804 = vpop.f32.mrf.mxu0
        %v805 = vadd.f32 0.0, %v804
        %v806 = vpop.f32.mrf.mxu0
        %807 = vdwg.mxu0
        %v808 = vmul.f32 %v802, %v622
        %v809 = vmul.f32 %v805, %v623
        %v810 = vsel %vm398, %v699, -1e+30
        %v811 = vsel %vm399, %v700, -1e+30
        %814 = vrot.lane.b32.xlu0 %v810, 32
        %v815 = vpop.permute.xlu0 %814
        %816 = vrot.lane.b32.xlu0 %v811, 32
        %v817 = vpop.permute.xlu0 %816
        %vm820 = vcmask 523520
        %821 = vst.msk [vmem:[%s362] sm:$0xff] %vm820, %v815
        %822 = vst.msk [vmem:[%s362 + $0x8] sm:$0xff] %vm820, %v817
        %v823 = vmul.f32 %v377, %v699
        %v824 = vmul.f32 %v378, %v700
        %v825 = vsel %vm398, %v823, -1e+30
        %v826 = vsel %vm399, %v824, -1e+30
        %829 = vrot.lane.b32.xlu0 %v825, 64
        %v830 = vpop.permute.xlu0 %829
        %831 = vrot.lane.b32.xlu0 %v826, 64
        %v832 = vpop.permute.xlu0 %831
        %vm835 = vcmask 785920
        %836 = vst.msk [vmem:[%s362] sm:$0xff] %vm835, %v830
        %837 = vst.msk [vmem:[%s362 + $0x8] sm:$0xff] %vm835, %v832
        %v838 = vmul.f32 %v377, %v808
        %v839 = vmul.f32 %v378, %v809
        %v840 = vsel %vm398, %v838, -1e+30
        %v841 = vsel %vm399, %v839, -1e+30
        %844 = vrot.lane.b32.xlu0 %v840, 96
        %v845 = vpop.permute.xlu0 %844
        %846 = vrot.lane.b32.xlu0 %v841, 96
        %v847 = vpop.permute.xlu0 %846
        %vm850 = vcmask 1048320
        %851 = vst.msk [vmem:[%s362] sm:$0xff] %vm850, %v845
        %852 = vst.msk [vmem:[%s362 + $0x8] sm:$0xff] %vm850, %v847
        %s853 = sand.u32 %s222, 1
        %s854 = scalar_lea.sflag [#allocation5], %s853
        %s855 = sand.u32 %s222, 1
        %s856 = smul.addr %s855, 16
        %s857 = scalar_lea.vmem [#allocation6], %s856
        // Predicated region
        $region57: #{tri_attention.1} parent=51 // pred_check
          %p858 = pneg %p232
        $region58: #{tri_attention.1} parent=51 // pred_check_branch
          %860 = sbr.rel (%p858) target = $region60
        $region59: #{tri_attention.1} parent=51 // pred_region
          %s862 = ssub.s32 256, 256
          %863 = vsyncadd %s854, %s862
          %s864 = smul.addr %s26, 2
          %s865 = smul.addr %s864, 128
          %s866 = scalar_lea.hbm %s8, %s865
          %s867 = sshll.u32 %s857, 4
          %s868 = int_to_ptr.vmem [resolvable:$true] %s867
          %873 = dma.vmem_to_hbm [thread:$0]  %s868, 256, %s866, %s854, 128, 128, 8
        $region60: #{tri_attention.1} parent=51 // pred_fallthru
          _
      $region52: #{tri_attention.1} parent=5 // pred_fallthru
        _
      %p874 = scmp.le.s32.totalorder 2, %s21
      // Predicated region
      $region61: #{tri_attention.1} parent=5 // pred_check
        %p875 = pneg %p874
      $region62: #{tri_attention.1} parent=5 // pred_check_branch
        %877 = sbr.rel (%p875) target = $region64
      $region63: #{tri_attention.1} parent=5 // pred_region
        %s878 = ssub.s32 %s21, 2
        // Predicated region
        $region65: #{tri_attention.1} parent=63 // pred_check
          %p879 = pneg %p238
        $region66: #{tri_attention.1} parent=63 // pred_check_branch
          %881 = sbr.rel (%p879) target = $region68
        $region67: #{tri_attention.1} parent=63 // pred_region
          %s882 = sand.u32 %s223, 1
          %s883 = scalar_lea.sflag [#allocation5], %s882
          %s884 = sand.u32 %s223, 1
          %s885 = smul.addr %s884, 16
          %s886 = scalar_lea.vmem [#allocation6], %s885
          %887 = dma.done %s883, 256
        $region68: #{tri_attention.1} parent=63 // pred_fallthru
          _
      $region64: #{tri_attention.1} parent=5 // pred_fallthru
        _
    $region6: #{tri_attention.1} parent=1 // loop_footer
      %s25 = sadd.s32 1, %s21
    $region7: #{tri_attention.1} parent=1 // loop_footer_branch
      %20 = sbr.rel target = $region3
    $region8: #{tri_attention.1} parent=1 // loop_exit
      _
    %888 = vsyncpa [#allocation4], 1
    %s889 = scalar_lea.sflag [#allocation4], 1
    %890 = vsyncpa %s889, 1
    %891 = vsyncpa [#allocation5], 1
    %s892 = scalar_lea.sflag [#allocation5], 1
    %893 = vsyncpa %s892, 1

</llo_original>
